<compile_context>
chip_gen: v5e
topology: v5e:2x2
jax: 0.10.0
libtpu: 0.0.40
codegen_flags: <defaults>
</compile_context>

<pallas_src>
import functools

import jax
import jax.numpy as jnp
from jax.experimental import pallas as pl
from jax.experimental.pallas import tpu as pltpu

LANE = 128
_MIB = 1024 * 1024


def _vmem_capacity_bytes():
    try:
        return int(pltpu.get_tpu_info().vmem_capacity_bytes)
    except Exception:
        return 64 * _MIB  # conservative default (v7x per-TensorCore VMEM)


_VMEM_CAP = _vmem_capacity_bytes()
# Tile working-set budget / scoped-VMEM limit derived from the actual chip
# (v5e/v6e: 128 MiB physical -> ~70 / 96 MiB; v7x: 64 MiB -> ~35 / 48 MiB),
# leaving headroom for compiler-internal scratch.
_TILE_BUDGET = max(24 * _MIB, int(_VMEM_CAP * 0.55))
_VMEM_LIMIT = max(32 * _MIB, min(int(_VMEM_CAP * 0.75), 100 * _MIB))


# ------------------------------- helpers ----------------------------------- #

def _round_up(x, m):
    return ((x + m - 1) // m) * m


def _pad2(a, rows, cols):
    pr, pc = rows - a.shape[0], cols - a.shape[1]
    if pr == 0 and pc == 0:
        return a
    return jnp.pad(a, ((0, pr), (0, pc)))


def _compiler_params(n_parallel, n_arbitrary):
    sem = ("parallel",) * n_parallel + ("arbitrary",) * n_arbitrary
    return pltpu.CompilerParams(dimension_semantics=sem,
                                vmem_limit_bytes=_VMEM_LIMIT)


# ----------------------------- Pallas kernels ------------------------------ #

def _matmul_kernel(a_ref, b_ref, o_ref, acc_ref):
    @pl.when(pl.program_id(2) == 0)
    def _init():
        acc_ref[...] = jnp.zeros_like(acc_ref)

    acc_ref[...] += jnp.dot(a_ref[...], b_ref[...],
                            preferred_element_type=jnp.float32)

    @pl.when(pl.program_id(2) == pl.num_programs(2) - 1)
    def _finalize():
        o_ref[...] = acc_ref[...].astype(o_ref.dtype)


def _matmul_bn_relu_kernel(a_ref, b_ref, scale_ref, shift_ref, o_ref, acc_ref):
    # conv matmul with fused BN (per-channel scale/shift) + ReLU epilogue (f32).
    @pl.when(pl.program_id(2) == 0)
    def _init():
        acc_ref[...] = jnp.zeros_like(acc_ref)

    acc_ref[...] += jnp.dot(a_ref[...], b_ref[...],
                            preferred_element_type=jnp.float32)

    @pl.when(pl.program_id(2) == pl.num_programs(2) - 1)
    def _finalize():
        y = jnp.maximum(acc_ref[...] * scale_ref[...] + shift_ref[...], 0.0)
        o_ref[...] = y.astype(o_ref.dtype)


def _matmul_add_kernel(a_ref, b_ref, c_ref, o_ref, acc_ref):
    # conv matmul with fused residual add on the last K step.
    @pl.when(pl.program_id(2) == 0)
    def _init():
        acc_ref[...] = jnp.zeros_like(acc_ref)

    acc_ref[...] += jnp.dot(a_ref[...], b_ref[...],
                            preferred_element_type=jnp.float32)

    @pl.when(pl.program_id(2) == pl.num_programs(2) - 1)
    def _finalize():
        o_ref[...] = (acc_ref[...] + c_ref[...].astype(jnp.float32)).astype(o_ref.dtype)


# ------------------------------ tiling logic -------------------------------- #

def _matmul_tiles(M, K, N, out_bytes, extra_bytes=0):
    """Pick (tm, tn, tk).  Prefer full-K / full-N blocks so the A matrix is
    streamed from HBM exactly once and the weight block is grid-invariant
    (fetched once, VMEM resident); shrink tm first, then fall back to K/N
    tiling, all under the per-generation VMEM budget."""

    def fits(tm, tn, tk):
        vmem = (tm * tk * 2 * 2 +            # A (bf16, double-buffered)
                tk * tn * 2 * 2 +            # B (bf16, double-buffered)
                tm * tn * 4 +                # f32 accumulator scratch
                tm * tn * out_bytes * 2 +    # output (double-buffered)
                tm * tn * extra_bytes * 2)   # residual input, if any
        return vmem <= _TILE_BUDGET

    tn_opts = [N] if N <= 1024 else [t for t in (768, 512, 256, 128) if N % t == 0]
    tk_opts = [K] + [t for t in (2048, 1024, 512, 256, 128) if K % t == 0 and t < K]
    tm_opts = [t for t in (1024, 512, 256, 128, 8) if M % t == 0]
    for tk in tk_opts:
        for tn in tn_opts:
            for tm in tm_opts:
                if fits(tm, tn, tk):
                    return tm, tn, tk
    return tm_opts[-1], tn_opts[-1], 128


# ----------------------------- Pallas wrappers ----------------------------- #

def pallas_matmul(a, b, out_dtype=jnp.float32):
    """a: (M, K) bf16, b: (K, N) bf16 -> (M, N); f32 MXU accumulate."""
    M, K = a.shape
    _, N = b.shape
    tm, tn, tk = _matmul_tiles(M, K, N, jnp.dtype(out_dtype).itemsize)
    return pl.pallas_call(
        _matmul_kernel,
        out_shape=jax.ShapeDtypeStruct((M, N), out_dtype),
        grid=(M // tm, N // tn, K // tk),
        in_specs=[pl.BlockSpec((tm, tk), lambda i, j, k: (i, k)),
                  pl.BlockSpec((tk, tn), lambda i, j, k: (k, j))],
        out_specs=pl.BlockSpec((tm, tn), lambda i, j, k: (i, j)),
        scratch_shapes=[pltpu.VMEM((tm, tn), jnp.float32)],
        compiler_params=_compiler_params(2, 1),
    )(a, b)


def pallas_matmul_bn_relu(a, b, scale, shift, out_dtype=jnp.bfloat16):
    """relu((a @ b) * scale + shift); BN + ReLU fused into the matmul epilogue."""
    M, K = a.shape
    _, N = b.shape
    tm, tn, tk = _matmul_tiles(M, K, N, jnp.dtype(out_dtype).itemsize)
    return pl.pallas_call(
        _matmul_bn_relu_kernel,
        out_shape=jax.ShapeDtypeStruct((M, N), out_dtype),
        grid=(M // tm, N // tn, K // tk),
        in_specs=[pl.BlockSpec((tm, tk), lambda i, j, k: (i, k)),
                  pl.BlockSpec((tk, tn), lambda i, j, k: (k, j)),
                  pl.BlockSpec((1, tn), lambda i, j, k: (0, j)),
                  pl.BlockSpec((1, tn), lambda i, j, k: (0, j))],
        out_specs=pl.BlockSpec((tm, tn), lambda i, j, k: (i, j)),
        scratch_shapes=[pltpu.VMEM((tm, tn), jnp.float32)],
        compiler_params=_compiler_params(2, 1),
    )(a, b, scale, shift)


def pallas_matmul_add(a, b, c, out_dtype=jnp.float32):
    """a @ b + c; residual add fused into the finalize step."""
    M, K = a.shape
    _, N = b.shape
    tm, tn, tk = _matmul_tiles(M, K, N, jnp.dtype(out_dtype).itemsize,
                               extra_bytes=jnp.dtype(c.dtype).itemsize)
    return pl.pallas_call(
        _matmul_add_kernel,
        out_shape=jax.ShapeDtypeStruct((M, N), out_dtype),
        grid=(M // tm, N // tn, K // tk),
        in_specs=[pl.BlockSpec((tm, tk), lambda i, j, k: (i, k)),
                  pl.BlockSpec((tk, tn), lambda i, j, k: (k, j)),
                  pl.BlockSpec((tm, tn), lambda i, j, k: (i, j))],
        out_specs=pl.BlockSpec((tm, tn), lambda i, j, k: (i, j)),
        scratch_shapes=[pltpu.VMEM((tm, tn), jnp.float32)],
        compiler_params=_compiler_params(2, 1),
    )(a, b, c)


# ------------------------------- JAX glue ---------------------------------- #

def _im2col_packed(x_nhwc, k, stride, pad, k_pad, m_pad):
    """k x k patches, tap-major / channel-minor, channels PACKED (no per-tap
    padding).  Total contraction dim zero-padded to k_pad, rows to m_pad."""
    N, H, W, C = x_nhwc.shape
    xp = jnp.pad(x_nhwc, ((0, 0), (pad, pad), (pad, pad), (0, 0)))
    Ho = (H + 2 * pad - k) // stride + 1
    Wo = (W + 2 * pad - k) // stride + 1
    cols = []
    for kh in range(k):
        for kw in range(k):
            cols.append(xp[:, kh:kh + stride * Ho:stride,
                           kw:kw + stride * Wo:stride, :])
    patches = jnp.concatenate(cols, axis=-1).reshape(N * Ho * Wo, k * k * C)
    return _pad2(patches, m_pad, k_pad), (N, Ho, Wo)


def _conv_w_to_mat(w_oihw, k_pad, cout_p, dtype=jnp.bfloat16):
    """(Cout, Cin, kh, kw) -> (k_pad, cout_p) matching _im2col_packed order."""
    Cout, Cin, kh, kw = w_oihw.shape
    w = jnp.transpose(w_oihw, (2, 3, 1, 0)).reshape(kh * kw * Cin, Cout)
    return _pad2(w, k_pad, cout_p).astype(dtype)


def _fold_bn(gamma, beta, mean, var, eps=1e-5):
    scale = gamma / jnp.sqrt(var + eps)
    shift = beta - mean * scale
    return scale, shift


def basic_block_forward(x_nchw, params, stride, drop_rate=0.0):
    """Pallas implementation of WideResNet BasicBlock.forward (NCHW in/out,
    eval-mode BatchNorm folded into per-channel scale/shift)."""
    N, Cin, H, W = x_nchw.shape
    Cout = params['w1'].shape[0]
    equal_in_out = (Cin == Cout)
    if equal_in_out:
        # PyTorch's torch.add(x, out) requires matching spatial dims.
        assert stride == 1, "equal_in_out path requires stride == 1"
    # TODO(synk): F.dropout (drop_rate > 0) and training-mode batch statistics
    # are not implemented; the reference WideResNet config uses drop_rate=0.0.
    assert drop_rate == 0.0

    cin_p = _round_up(Cin, LANE)
    cout_p = _round_up(Cout, LANE)

    s1, t1 = _fold_bn(params['g1'], params['b1'], params['m1'], params['v1'])
    s2, t2 = _fold_bn(params['g2'], params['b2'], params['m2'], params['v2'])
    scale2 = _pad2(s2.reshape(1, Cout), 1, cout_p).astype(jnp.float32)
    shift2 = _pad2(t2.reshape(1, Cout), 1, cout_p).astype(jnp.float32)

    # NCHW -> NHWC once at the block boundary.
    # TODO(synk): in a full network keep activations in NHWC / (M, C) layout
    # between blocks and hoist this transpose + final slice to the net boundary.
    x_nhwc = jnp.transpose(x_nchw, (0, 2, 3, 1)).astype(jnp.float32)

    # bn1 + relu1 in f32, cast to bf16 for the MXU.  XLA fuses this elementwise
    # op into the im2col patch construction below, so act1 never makes a
    # separate HBM round trip.
    act1 = jnp.maximum(x_nhwc * s1 + t1, 0.0).astype(jnp.bfloat16)

    Ho = (H + 2 - 3) // stride + 1
    Wo = (W + 2 - 3) // stride + 1
    M1 = N * Ho * Wo
    M1p = _round_up(M1, LANE)

    # conv1 (3x3, stride, pad=1): packed-tap im2col matmul with bn2 + relu2
    # fused into the matmul epilogue.
    K1p = _round_up(9 * Cin, LANE)
    w1_mat = _conv_w_to_mat(params['w1'], K1p, cout_p)
    p1, _ = _im2col_packed(act1, 3, stride, 1, K1p, M1p)
    act2 = pallas_matmul_bn_relu(p1, w1_mat, scale2, shift2, out_dtype=jnp.bfloat16)
    act2_nhwc = act2[:M1, :Cout].reshape(N, Ho, Wo, Cout)

    # TODO(synk): dropout would be applied here when drop_rate > 0.

    # shortcut branch
    if equal_in_out:
        # identity residual: original (pre-BN) x, stride == 1 so M0 == M1.
        shortcut = _pad2(x_nhwc.reshape(N * H * W, Cin), M1p, cout_p)
    else:
        # 1x1 strided conv on act1: its input is exactly the centre tap
        # (kh=kw=1) of conv1's im2col matrix, so reuse those columns.
        xs = _pad2(p1[:, 4 * Cin:5 * Cin], M1p, cin_p)
        ws = jnp.transpose(params['ws'][:, :, 0, 0])          # (Cin, Cout)
        ws_mat = _pad2(ws, cin_p, cout_p).astype(jnp.bfloat16)
        shortcut = pallas_matmul(xs, ws_mat, out_dtype=jnp.float32)

    # conv2 (3x3, stride=1, pad=1) with the residual add fused into finalize.
    K2p = _round_up(9 * Cout, LANE)
    w2_mat = _conv_w_to_mat(params['w2'], K2p, cout_p)
    p2, _ = _im2col_packed(act2_nhwc, 3, 1, 1, K2p, M1p)
    out = pallas_matmul_add(p2, w2_mat, shortcut, out_dtype=jnp.float32)

    out = out[:M1, :Cout].reshape(N, Ho, Wo, Cout)
    return jnp.transpose(out, (0, 3, 1, 2))


# --------------------------- pure-JAX reference ----------------------------- #

def _ref_forward(x, p, stride):
    """Eval-mode BN reference; conv inputs quantized to bf16 to mirror the
    Pallas bf16-MXU / f32-accumulate path."""
    eps = 1e-5

    def q(t):
        return t.astype(jnp.bfloat16).astype(jnp.float32)

    def bn(x, g, b, m, v):
        return (g[None, :, None, None] * (x - m[None, :, None, None])
                / jnp.sqrt(v[None, :, None, None] + eps) + b[None, :, None, None])

    def conv(x, w, s, pad):
        return jax.lax.conv_general_dilated(
            q(x), q(w), (s, s), [(pad, pad), (pad, pad)],
            dimension_numbers=('NCHW', 'OIHW', 'NCHW'))

    Cin = x.shape[1]
    Cout = p['w1'].shape[0]
    equal = (Cin == Cout)
    a1 = jax.nn.relu(bn(x, p['g1'], p['b1'], p['m1'], p['v1']))
    residual = x if equal else conv(a1, p['ws'], stride, 0)
    out = conv(a1, p['w1'], stride, 1)
    out = jax.nn.relu(bn(out, p['g2'], p['b2'], p['m2'], p['v2']))
    out = conv(out, p['w2'], 1, 1)
    return residual + out


# ---------------------------------- main ------------------------------------ #

if __name__ == "__main__":
    key = jax.random.PRNGKey(0)

    def rand_params(key, cin, cout, with_shortcut):
        ks = jax.random.split(key, 12)
        p = {
            'w1': 0.1 * jax.random.normal(ks[0], (cout, cin, 3, 3), jnp.float32),
            'w2': 0.1 * jax.random.normal(ks[1], (cout, cout, 3, 3), jnp.float32),
            'g1': jax.random.uniform(ks[3], (cin,), jnp.float32, 0.5, 1.5),
            'b1': 0.1 * jax.random.normal(ks[4], (cin,), jnp.float32),
            'm1': 0.1 * jax.random.normal(ks[5], (cin,), jnp.float32),
            'v1': jax.random.uniform(ks[6], (cin,), jnp.float32, 0.5, 1.5),
            'g2': jax.random.uniform(ks[7], (cout,), jnp.float32, 0.5, 1.5),
            'b2': 0.1 * jax.random.normal(ks[8], (cout,), jnp.float32),
            'm2': 0.1 * jax.random.normal(ks[9], (cout,), jnp.float32),
            'v2': jax.random.uniform(ks[10], (cout,), jnp.float32, 0.5, 1.5),
        }
        if with_shortcut:
            p['ws'] = 0.1 * jax.random.normal(ks[2], (cout, cin, 1, 1), jnp.float32)
        return p, ks[11]

    k1, k2 = jax.random.split(key)

    # Case 1: in_planes != out_planes, stride 2 -> exercises convShortcut.
    params_a, kxa = rand_params(k1, 4, 8, True)
    x_a = jax.random.normal(kxa, (2, 4, 16, 16), jnp.float32)
    fwd_a = jax.jit(functools.partial(basic_block_forward, stride=2))
    out_a = jax.block_until_ready(fwd_a(x_a, params_a))
    ref_a = jax.block_until_ready(_ref_forward(x_a, params_a, 2))
    assert out_a.shape == ref_a.shape == (2, 8, 8, 8), out_a.shape
    err_a = float(jnp.max(jnp.abs(out_a - ref_a)))
    assert jnp.allclose(out_a, ref_a, rtol=1e-2, atol=1e-2), err_a

    # Case 2: in_planes == out_planes, stride 1 -> identity shortcut.
    params_b, kxb = rand_params(k2, 8, 8, False)
    x_b = jax.random.normal(kxb, (2, 8, 16, 16), jnp.float32)
    fwd_b = jax.jit(functools.partial(basic_block_forward, stride=1))
    out_b = jax.block_until_ready(fwd_b(x_b, params_b))
    ref_b = jax.block_until_ready(_ref_forward(x_b, params_b, 1))
    assert out_b.shape == ref_b.shape == (2, 8, 16, 16), out_b.shape
    err_b = float(jnp.max(jnp.abs(out_b - ref_b)))
    assert jnp.allclose(out_b, ref_b, rtol=1e-2, atol=1e-2), err_b

    print("KERNEL_OK")
</pallas_src>

<mosaic_0001>
module attributes {stable_mosaic.version = 11 : i64} {
  func.func @_matmul_bn_relu_kernel(%arg0: i32, %arg1: i32, %arg2: i32, %arg3: memref<128x128xbf16, #tpu.memory_space<vmem>>, %arg4: memref<128x128xbf16, #tpu.memory_space<vmem>>, %arg5: memref<1x128xf32, #tpu.memory_space<vmem>>, %arg6: memref<1x128xf32, #tpu.memory_space<vmem>>, %arg7: memref<128x128xbf16, #tpu.memory_space<vmem>>, %arg8: memref<128x128xf32, #tpu.memory_space<vmem>>) attributes {dimension_semantics = [#tpu.dimension_semantics<parallel>, #tpu.dimension_semantics<parallel>, #tpu.dimension_semantics<arbitrary>], iteration_bounds = array<i64: 1, 1, 1>, scalar_prefetch = 0 : i64, scratch_operands = 1 : i64, tpu.core_type = #tpu.core_type<tc>, window_params = [{transform_indices = @transform_0, window_bounds = array<i64: 128, 128>}, {transform_indices = @transform_1, window_bounds = array<i64: 128, 128>}, {transform_indices = @transform_2, window_bounds = array<i64: 1, 128>}, {transform_indices = @transform_3, window_bounds = array<i64: 1, 128>}, {transform_indices = @transform_4, window_bounds = array<i64: 128, 128>}]} {
    %c0_i32 = arith.constant 0 : i32
    %0 = arith.cmpi eq, %arg2, %c0_i32 : i32
    %1 = arith.extui %0 : i1 to i32
    %c0_i32_0 = arith.constant 0 : i32
    %2 = arith.cmpi ne, %1, %c0_i32_0 : i32
    scf.if %2 {
      %cst_10 = arith.constant 0.000000e+00 : f32
      %12 = vector.broadcast %cst_10 : f32 to vector<128x128xf32>
      %c0_11 = arith.constant 0 : index
      %c0_12 = arith.constant 0 : index
      %13 = vector.load %arg8[%c0_11, %c0_12] : memref<128x128xf32, #tpu.memory_space<vmem>>, vector<128x128xf32>
      tpu.vector_store %arg8[%c0_11, %c0_12], %12 {strides = array<i32>} : memref<128x128xf32, #tpu.memory_space<vmem>>, vector<128x128xf32>,
    } else {
    }
    %c0 = arith.constant 0 : index
    %c0_1 = arith.constant 0 : index
    %3 = vector.load %arg8[%c0, %c0_1] : memref<128x128xf32, #tpu.memory_space<vmem>>, vector<128x128xf32>
    %c0_2 = arith.constant 0 : index
    %c0_3 = arith.constant 0 : index
    %4 = vector.load %arg3[%c0_2, %c0_3] : memref<128x128xbf16, #tpu.memory_space<vmem>>, vector<128x128xbf16>
    %c0_4 = arith.constant 0 : index
    %c0_5 = arith.constant 0 : index
    %5 = vector.load %arg4[%c0_4, %c0_5] : memref<128x128xbf16, #tpu.memory_space<vmem>>, vector<128x128xbf16>
    %cst = arith.constant dense<0.000000e+00> : vector<128x128xf32>
    %6 = tpu.matmul %4, %5, %cst {dimension_numbers = #tpu.dot_dimension_numbers<[1], [0], [0], [1], [0, 0, 1, 1], [], []>} : vector<128x128xbf16>, vector<128x128xbf16>, vector<128x128xf32> -> vector<128x128xf32>
    %7 = arith.addf %3, %6 : vector<128x128xf32>
    %c0_6 = arith.constant 0 : index
    %c0_7 = arith.constant 0 : index
    %8 = vector.load %arg8[%c0_6, %c0_7] : memref<128x128xf32, #tpu.memory_space<vmem>>, vector<128x128xf32>
    tpu.vector_store %arg8[%c0_6, %c0_7], %7 {strides = array<i32>} : memref<128x128xf32, #tpu.memory_space<vmem>>, vector<128x128xf32>,
    %c0_i32_8 = arith.constant 0 : i32
    %9 = arith.cmpi eq, %arg2, %c0_i32_8 : i32
    %10 = arith.extui %9 : i1 to i32
    %c0_i32_9 = arith.constant 0 : i32
    %11 = arith.cmpi ne, %10, %c0_i32_9 : i32
    scf.if %11 {
      %c0_10 = arith.constant 0 : index
      %c0_11 = arith.constant 0 : index
      %12 = vector.load %arg8[%c0_10, %c0_11] : memref<128x128xf32, #tpu.memory_space<vmem>>, vector<128x128xf32>
      %c0_12 = arith.constant 0 : index
      %c0_13 = arith.constant 0 : index
      %13 = vector.load %arg5[%c0_12, %c0_13] : memref<1x128xf32, #tpu.memory_space<vmem>>, vector<1x128xf32>
      %14 = vector.broadcast %13 : vector<1x128xf32> to vector<128x128xf32>
      %15 = arith.mulf %12, %14 : vector<128x128xf32>
      %c0_14 = arith.constant 0 : index
      %c0_15 = arith.constant 0 : index
      %16 = vector.load %arg6[%c0_14, %c0_15] : memref<1x128xf32, #tpu.memory_space<vmem>>, vector<1x128xf32>
      %17 = vector.broadcast %16 : vector<1x128xf32> to vector<128x128xf32>
      %18 = arith.addf %15, %17 : vector<128x128xf32>
      %cst_16 = arith.constant 0.000000e+00 : f32
      %19 = vector.broadcast %cst_16 : f32 to vector<128x128xf32>
      %20 = arith.maximumf %18, %19 : vector<128x128xf32>
      %21 = arith.truncf %20 : vector<128x128xf32> to vector<128x128xbf16>
      %c0_17 = arith.constant 0 : index
      %c0_18 = arith.constant 0 : index
      %22 = vector.load %arg7[%c0_17, %c0_18] : memref<128x128xbf16, #tpu.memory_space<vmem>>, vector<128x128xbf16>
      tpu.vector_store %arg7[%c0_17, %c0_18], %21 {strides = array<i32>} : memref<128x128xbf16, #tpu.memory_space<vmem>>, vector<128x128xbf16>,
    } else {
    }
    return
  }
  func.func @transform_0(%arg0: i32, %arg1: i32, %arg2: i32) -> (i32, i32) {
    %c0_i32 = arith.constant 0 : i32
    return %arg0, %arg2 : i32, i32
  }
  func.func @transform_1(%arg0: i32, %arg1: i32, %arg2: i32) -> (i32, i32) {
    %c0_i32 = arith.constant 0 : i32
    return %arg2, %arg1 : i32, i32
  }
  func.func @transform_2(%arg0: i32, %arg1: i32, %arg2: i32) -> (i32, i32) {
    %c0_i32 = arith.constant 0 : i32
    %c0_i32_0 = arith.constant 0 : i32
    return %c0_i32, %arg1 : i32, i32
  }
  func.func @transform_3(%arg0: i32, %arg1: i32, %arg2: i32) -> (i32, i32) {
    %c0_i32 = arith.constant 0 : i32
    %c0_i32_0 = arith.constant 0 : i32
    return %c0_i32, %arg1 : i32, i32
  }
  func.func @transform_4(%arg0: i32, %arg1: i32, %arg2: i32) -> (i32, i32) {
    %c0_i32 = arith.constant 0 : i32
    return %arg0, %arg1 : i32, i32
  }
}

module attributes {stable_mosaic.version = 11 : i64} {
  func.func @_matmul_kernel(%arg0: i32, %arg1: i32, %arg2: i32, %arg3: memref<128x128xbf16, #tpu.memory_space<vmem>>, %arg4: memref<128x128xbf16, #tpu.memory_space<vmem>>, %arg5: memref<128x128xf32, #tpu.memory_space<vmem>>, %arg6: memref<128x128xf32, #tpu.memory_space<vmem>>) attributes {dimension_semantics = [#tpu.dimension_semantics<parallel>, #tpu.dimension_semantics<parallel>, #tpu.dimension_semantics<arbitrary>], iteration_bounds = array<i64: 1, 1, 1>, scalar_prefetch = 0 : i64, scratch_operands = 1 : i64, tpu.core_type = #tpu.core_type<tc>, window_params = [{transform_indices = @transform_0, window_bounds = array<i64: 128, 128>}, {transform_indices = @transform_1, window_bounds = array<i64: 128, 128>}, {transform_indices = @transform_2, window_bounds = array<i64: 128, 128>}]} {
    %c0_i32 = arith.constant 0 : i32
    %0 = arith.cmpi eq, %arg2, %c0_i32 : i32
    %1 = arith.extui %0 : i1 to i32
    %c0_i32_0 = arith.constant 0 : i32
    %2 = arith.cmpi ne, %1, %c0_i32_0 : i32
    scf.if %2 {
      %cst_10 = arith.constant 0.000000e+00 : f32
      %12 = vector.broadcast %cst_10 : f32 to vector<128x128xf32>
      %c0_11 = arith.constant 0 : index
      %c0_12 = arith.constant 0 : index
      %13 = vector.load %arg6[%c0_11, %c0_12] : memref<128x128xf32, #tpu.memory_space<vmem>>, vector<128x128xf32>
      tpu.vector_store %arg6[%c0_11, %c0_12], %12 {strides = array<i32>} : memref<128x128xf32, #tpu.memory_space<vmem>>, vector<128x128xf32>,
    } else {
    }
    %c0 = arith.constant 0 : index
    %c0_1 = arith.constant 0 : index
    %3 = vector.load %arg6[%c0, %c0_1] : memref<128x128xf32, #tpu.memory_space<vmem>>, vector<128x128xf32>
    %c0_2 = arith.constant 0 : index
    %c0_3 = arith.constant 0 : index
    %4 = vector.load %arg3[%c0_2, %c0_3] : memref<128x128xbf16, #tpu.memory_space<vmem>>, vector<128x128xbf16>
    %c0_4 = arith.constant 0 : index
    %c0_5 = arith.constant 0 : index
    %5 = vector.load %arg4[%c0_4, %c0_5] : memref<128x128xbf16, #tpu.memory_space<vmem>>, vector<128x128xbf16>
    %cst = arith.constant dense<0.000000e+00> : vector<128x128xf32>
    %6 = tpu.matmul %4, %5, %cst {dimension_numbers = #tpu.dot_dimension_numbers<[1], [0], [0], [1], [0, 0, 1, 1], [], []>} : vector<128x128xbf16>, vector<128x128xbf16>, vector<128x128xf32> -> vector<128x128xf32>
    %7 = arith.addf %3, %6 : vector<128x128xf32>
    %c0_6 = arith.constant 0 : index
    %c0_7 = arith.constant 0 : index
    %8 = vector.load %arg6[%c0_6, %c0_7] : memref<128x128xf32, #tpu.memory_space<vmem>>, vector<128x128xf32>
    tpu.vector_store %arg6[%c0_6, %c0_7], %7 {strides = array<i32>} : memref<128x128xf32, #tpu.memory_space<vmem>>, vector<128x128xf32>,
    %c0_i32_8 = arith.constant 0 : i32
    %9 = arith.cmpi eq, %arg2, %c0_i32_8 : i32
    %10 = arith.extui %9 : i1 to i32
    %c0_i32_9 = arith.constant 0 : i32
    %11 = arith.cmpi ne, %10, %c0_i32_9 : i32
    scf.if %11 {
      %c0_10 = arith.constant 0 : index
      %c0_11 = arith.constant 0 : index
      %12 = vector.load %arg6[%c0_10, %c0_11] : memref<128x128xf32, #tpu.memory_space<vmem>>, vector<128x128xf32>
      %c0_12 = arith.constant 0 : index
      %c0_13 = arith.constant 0 : index
      %13 = vector.load %arg5[%c0_12, %c0_13] : memref<128x128xf32, #tpu.memory_space<vmem>>, vector<128x128xf32>
      tpu.vector_store %arg5[%c0_12, %c0_13], %12 {strides = array<i32>} : memref<128x128xf32, #tpu.memory_space<vmem>>, vector<128x128xf32>,
    } else {
    }
    return
  }
  func.func @transform_0(%arg0: i32, %arg1: i32, %arg2: i32) -> (i32, i32) {
    %c0_i32 = arith.constant 0 : i32
    return %arg0, %arg2 : i32, i32
  }
  func.func @transform_1(%arg0: i32, %arg1: i32, %arg2: i32) -> (i32, i32) {
    %c0_i32 = arith.constant 0 : i32
    return %arg2, %arg1 : i32, i32
  }
  func.func @transform_2(%arg0: i32, %arg1: i32, %arg2: i32) -> (i32, i32) {
    %c0_i32 = arith.constant 0 : i32
    return %arg0, %arg1 : i32, i32
  }
}

module attributes {stable_mosaic.version = 11 : i64} {
  func.func @_matmul_add_kernel(%arg0: i32, %arg1: i32, %arg2: i32, %arg3: memref<128x128xbf16, #tpu.memory_space<vmem>>, %arg4: memref<128x128xbf16, #tpu.memory_space<vmem>>, %arg5: memref<128x128xf32, #tpu.memory_space<vmem>>, %arg6: memref<128x128xf32, #tpu.memory_space<vmem>>, %arg7: memref<128x128xf32, #tpu.memory_space<vmem>>) attributes {dimension_semantics = [#tpu.dimension_semantics<parallel>, #tpu.dimension_semantics<parallel>, #tpu.dimension_semantics<arbitrary>], iteration_bounds = array<i64: 1, 1, 1>, scalar_prefetch = 0 : i64, scratch_operands = 1 : i64, tpu.core_type = #tpu.core_type<tc>, window_params = [{transform_indices = @transform_0, window_bounds = array<i64: 128, 128>}, {transform_indices = @transform_1, window_bounds = array<i64: 128, 128>}, {transform_indices = @transform_2, window_bounds = array<i64: 128, 128>}, {transform_indices = @transform_3, window_bounds = array<i64: 128, 128>}]} {
    %c0_i32 = arith.constant 0 : i32
    %0 = arith.cmpi eq, %arg2, %c0_i32 : i32
    %1 = arith.extui %0 : i1 to i32
    %c0_i32_0 = arith.constant 0 : i32
    %2 = arith.cmpi ne, %1, %c0_i32_0 : i32
    scf.if %2 {
      %cst_10 = arith.constant 0.000000e+00 : f32
      %12 = vector.broadcast %cst_10 : f32 to vector<128x128xf32>
      %c0_11 = arith.constant 0 : index
      %c0_12 = arith.constant 0 : index
      %13 = vector.load %arg7[%c0_11, %c0_12] : memref<128x128xf32, #tpu.memory_space<vmem>>, vector<128x128xf32>
      tpu.vector_store %arg7[%c0_11, %c0_12], %12 {strides = array<i32>} : memref<128x128xf32, #tpu.memory_space<vmem>>, vector<128x128xf32>,
    } else {
    }
    %c0 = arith.constant 0 : index
    %c0_1 = arith.constant 0 : index
    %3 = vector.load %arg7[%c0, %c0_1] : memref<128x128xf32, #tpu.memory_space<vmem>>, vector<128x128xf32>
    %c0_2 = arith.constant 0 : index
    %c0_3 = arith.constant 0 : index
    %4 = vector.load %arg3[%c0_2, %c0_3] : memref<128x128xbf16, #tpu.memory_space<vmem>>, vector<128x128xbf16>
    %c0_4 = arith.constant 0 : index
    %c0_5 = arith.constant 0 : index
    %5 = vector.load %arg4[%c0_4, %c0_5] : memref<128x128xbf16, #tpu.memory_space<vmem>>, vector<128x128xbf16>
    %cst = arith.constant dense<0.000000e+00> : vector<128x128xf32>
    %6 = tpu.matmul %4, %5, %cst {dimension_numbers = #tpu.dot_dimension_numbers<[1], [0], [0], [1], [0, 0, 1, 1], [], []>} : vector<128x128xbf16>, vector<128x128xbf16>, vector<128x128xf32> -> vector<128x128xf32>
    %7 = arith.addf %3, %6 : vector<128x128xf32>
    %c0_6 = arith.constant 0 : index
    %c0_7 = arith.constant 0 : index
    %8 = vector.load %arg7[%c0_6, %c0_7] : memref<128x128xf32, #tpu.memory_space<vmem>>, vector<128x128xf32>
    tpu.vector_store %arg7[%c0_6, %c0_7], %7 {strides = array<i32>} : memref<128x128xf32, #tpu.memory_space<vmem>>, vector<128x128xf32>,
    %c0_i32_8 = arith.constant 0 : i32
    %9 = arith.cmpi eq, %arg2, %c0_i32_8 : i32
    %10 = arith.extui %9 : i1 to i32
    %c0_i32_9 = arith.constant 0 : i32
    %11 = arith.cmpi ne, %10, %c0_i32_9 : i32
    scf.if %11 {
      %c0_10 = arith.constant 0 : index
      %c0_11 = arith.constant 0 : index
      %12 = vector.load %arg7[%c0_10, %c0_11] : memref<128x128xf32, #tpu.memory_space<vmem>>, vector<128x128xf32>
      %c0_12 = arith.constant 0 : index
      %c0_13 = arith.constant 0 : index
      %13 = vector.load %arg5[%c0_12, %c0_13] : memref<128x128xf32, #tpu.memory_space<vmem>>, vector<128x128xf32>
      %14 = arith.addf %12, %13 : vector<128x128xf32>
      %c0_14 = arith.constant 0 : index
      %c0_15 = arith.constant 0 : index
      %15 = vector.load %arg6[%c0_14, %c0_15] : memref<128x128xf32, #tpu.memory_space<vmem>>, vector<128x128xf32>
      tpu.vector_store %arg6[%c0_14, %c0_15], %14 {strides = array<i32>} : memref<128x128xf32, #tpu.memory_space<vmem>>, vector<128x128xf32>,
    } else {
    }
    return
  }
  func.func @transform_0(%arg0: i32, %arg1: i32, %arg2: i32) -> (i32, i32) {
    %c0_i32 = arith.constant 0 : i32
    return %arg0, %arg2 : i32, i32
  }
  func.func @transform_1(%arg0: i32, %arg1: i32, %arg2: i32) -> (i32, i32) {
    %c0_i32 = arith.constant 0 : i32
    return %arg2, %arg1 : i32, i32
  }
  func.func @transform_2(%arg0: i32, %arg1: i32, %arg2: i32) -> (i32, i32) {
    %c0_i32 = arith.constant 0 : i32
    return %arg0, %arg1 : i32, i32
  }
  func.func @transform_3(%arg0: i32, %arg1: i32, %arg2: i32) -> (i32, i32) {
    %c0_i32 = arith.constant 0 : i32
    return %arg0, %arg1 : i32, i32
  }
}

</mosaic_0001>

<llo_original>
// kernel: basic_block_forward.3
$region0: #{basic_block_forward.3}
  #allocation0 [shape = 'u32[]', space=smem, size = 0x4, offset = 0x4, fixed_abs, tag = 'smem constant byte address 0x4 - core index']
  #allocation1 [shape = 'u32[72,128]{1,0:T(1,128)}', space=vmem, size = 0x9000, scoped, tag = 'internal scratch']
  #allocation2 [shape = 'f32[128,128]{1,0:T(8,128)}', space=vmem, size = 0x10000, scoped, tag = 'scratch operand']
  %s0 = inlined_call_operand.vmem [shape: bf16[128,128], index: 0, kind: input, shape index: {}]
  %s1 = inlined_call_operand.vmem [shape: bf16[128,128], index: 1, kind: input, shape index: {}]
  %s2 = inlined_call_operand.vmem [shape: f32[1,128], index: 2, kind: input, shape index: {}]
  %s3 = inlined_call_operand.vmem [shape: f32[1,128], index: 3, kind: input, shape index: {}]
  %s4 = inlined_call_operand.vmem [shape: bf16[128,128], index: 4, kind: output, shape index: {}]
  %s5 = sld [smem:[#allocation0]]
  $region34: #{basic_block_forward.3} parent=0
    _
  %s7 = ssub.s32 1, %s5
  %s8 = scalar_select 0, %s7, %s5
  // Predicated region
  $region2: #{basic_block_forward.3} parent=0 // pred_check
    _
  $region3: #{basic_block_forward.3} parent=0 // pred_check_branch
    %10 = sbr.rel (0) target = $region5
  $region4: #{basic_block_forward.3} parent=0 // pred_region
    _
  $region5: #{basic_block_forward.3} parent=0 // pred_fallthru
    _
  // Predicated region
  $region6: #{basic_block_forward.3} parent=0 // pred_check
    _
  $region7: #{basic_block_forward.3} parent=0 // pred_check_branch
    %12 = sbr.rel (0) target = $region9
  $region8: #{basic_block_forward.3} parent=0 // pred_region
    _
  $region9: #{basic_block_forward.3} parent=0 // pred_fallthru
    _
  // Predicated region
  $region10: #{basic_block_forward.3} parent=0 // pred_check
    _
  $region11: #{basic_block_forward.3} parent=0 // pred_check_branch
    %14 = sbr.rel (0) target = $region13
  $region12: #{basic_block_forward.3} parent=0 // pred_region
    _
  $region13: #{basic_block_forward.3} parent=0 // pred_fallthru
    _
  // Predicated region
  $region14: #{basic_block_forward.3} parent=0 // pred_check
    _
  $region15: #{basic_block_forward.3} parent=0 // pred_check_branch
    %16 = sbr.rel (0) target = $region17
  $region16: #{basic_block_forward.3} parent=0 // pred_region
    _
  $region17: #{basic_block_forward.3} parent=0 // pred_fallthru
    _
  %p17 = scmp.eq.s32.totalorder 0, 0
  // Predicated region
  $region18: #{basic_block_forward.3} parent=0 // pred_check
    %p18 = pneg %p17
  $region19: #{basic_block_forward.3} parent=0 // pred_check_branch
    %20 = sbr.rel (%p18) target = $region21
  $region20: #{basic_block_forward.3} parent=0 // pred_region
    %21 = vst [vmem:[#allocation2] sm:$0xff] 0.0
    %22 = vst [vmem:[#allocation2 + $0x8] sm:$0xff] 0.0
    %23 = vst [vmem:[#allocation2 + $0x10] sm:$0xff] 0.0
    %24 = vst [vmem:[#allocation2 + $0x18] sm:$0xff] 0.0
    %25 = vst [vmem:[#allocation2 + $0x20] sm:$0xff] 0.0
    %26 = vst [vmem:[#allocation2 + $0x28] sm:$0xff] 0.0
    %27 = vst [vmem:[#allocation2 + $0x30] sm:$0xff] 0.0
    %28 = vst [vmem:[#allocation2 + $0x38] sm:$0xff] 0.0
    %29 = vst [vmem:[#allocation2 + $0x40] sm:$0xff] 0.0
    %30 = vst [vmem:[#allocation2 + $0x48] sm:$0xff] 0.0
    %31 = vst [vmem:[#allocation2 + $0x50] sm:$0xff] 0.0
    %32 = vst [vmem:[#allocation2 + $0x58] sm:$0xff] 0.0
    %33 = vst [vmem:[#allocation2 + $0x60] sm:$0xff] 0.0
    %34 = vst [vmem:[#allocation2 + $0x68] sm:$0xff] 0.0
    %35 = vst [vmem:[#allocation2 + $0x70] sm:$0xff] 0.0
    %36 = vst [vmem:[#allocation2 + $0x78] sm:$0xff] 0.0
  $region21: #{basic_block_forward.3} parent=0 // pred_fallthru
    _
  %v37 = vld [vmem:[#allocation2] sm:$0xff]
  %v38 = vld [vmem:[#allocation2 + $0x8] sm:$0xff]
  %v39 = vld [vmem:[#allocation2 + $0x10] sm:$0xff]
  %v40 = vld [vmem:[#allocation2 + $0x18] sm:$0xff]
  %v41 = vld [vmem:[#allocation2 + $0x20] sm:$0xff]
  %v42 = vld [vmem:[#allocation2 + $0x28] sm:$0xff]
  %v43 = vld [vmem:[#allocation2 + $0x30] sm:$0xff]
  %v44 = vld [vmem:[#allocation2 + $0x38] sm:$0xff]
  %v45 = vld [vmem:[#allocation2 + $0x40] sm:$0xff]
  %v46 = vld [vmem:[#allocation2 + $0x48] sm:$0xff]
  %v47 = vld [vmem:[#allocation2 + $0x50] sm:$0xff]
  %v48 = vld [vmem:[#allocation2 + $0x58] sm:$0xff]
  %v49 = vld [vmem:[#allocation2 + $0x60] sm:$0xff]
  %v50 = vld [vmem:[#allocation2 + $0x68] sm:$0xff]
  %v51 = vld [vmem:[#allocation2 + $0x70] sm:$0xff]
  %v52 = vld [vmem:[#allocation2 + $0x78] sm:$0xff]
  %v53 = vld [vmem:[%s0] sm:$0xf]
  %v54 = vld [vmem:[%s0 + $0x4] sm:$0xf]
  %v55 = vld [vmem:[%s0 + $0x8] sm:$0xf]
  %v56 = vld [vmem:[%s0 + $0xc] sm:$0xf]
  %v57 = vld [vmem:[%s0 + $0x10] sm:$0xf]
  %v58 = vld [vmem:[%s0 + $0x14] sm:$0xf]
  %v59 = vld [vmem:[%s0 + $0x18] sm:$0xf]
  %v60 = vld [vmem:[%s0 + $0x1c] sm:$0xf]
  %v61 = vld [vmem:[%s0 + $0x20] sm:$0xf]
  %v62 = vld [vmem:[%s0 + $0x24] sm:$0xf]
  %v63 = vld [vmem:[%s0 + $0x28] sm:$0xf]
  %v64 = vld [vmem:[%s0 + $0x2c] sm:$0xf]
  %v65 = vld [vmem:[%s0 + $0x30] sm:$0xf]
  %v66 = vld [vmem:[%s0 + $0x34] sm:$0xf]
  %v67 = vld [vmem:[%s0 + $0x38] sm:$0xf]
  %v68 = vld [vmem:[%s0 + $0x3c] sm:$0xf]
  %v69 = vld [vmem:[%s1] sm:$0xf]
  %v70 = vld [vmem:[%s1 + $0x4] sm:$0xf]
  %v71 = vld [vmem:[%s1 + $0x8] sm:$0xf]
  %v72 = vld [vmem:[%s1 + $0xc] sm:$0xf]
  %v73 = vld [vmem:[%s1 + $0x10] sm:$0xf]
  %v74 = vld [vmem:[%s1 + $0x14] sm:$0xf]
  %v75 = vld [vmem:[%s1 + $0x18] sm:$0xf]
  %v76 = vld [vmem:[%s1 + $0x1c] sm:$0xf]
  %v77 = vld [vmem:[%s1 + $0x20] sm:$0xf]
  %v78 = vld [vmem:[%s1 + $0x24] sm:$0xf]
  %v79 = vld [vmem:[%s1 + $0x28] sm:$0xf]
  %v80 = vld [vmem:[%s1 + $0x2c] sm:$0xf]
  %v81 = vld [vmem:[%s1 + $0x30] sm:$0xf]
  %v82 = vld [vmem:[%s1 + $0x34] sm:$0xf]
  %v83 = vld [vmem:[%s1 + $0x38] sm:$0xf]
  %v84 = vld [vmem:[%s1 + $0x3c] sm:$0xf]
  %v101 = vunpack.c.l.b16 %v53
  %v102 = vunpack.c.l.b16 %v54
  %v103 = vunpack.c.l.b16 %v55
  %v104 = vunpack.c.l.b16 %v56
  %v105 = vunpack.c.l.b16 %v57
  %v106 = vunpack.c.l.b16 %v58
  %v107 = vunpack.c.l.b16 %v59
  %v108 = vunpack.c.l.b16 %v60
  %v109 = vunpack.c.l.b16 %v61
  %v110 = vunpack.c.l.b16 %v62
  %v111 = vunpack.c.l.b16 %v63
  %v112 = vunpack.c.l.b16 %v64
  %v113 = vunpack.c.l.b16 %v65
  %v114 = vunpack.c.l.b16 %v66
  %v115 = vunpack.c.l.b16 %v67
  %v116 = vunpack.c.l.b16 %v68
  %v117 = vpack.c.b16 %v102, %v101
  %v118 = vpack.c.b16 %v104, %v103
  %v119 = vpack.c.b16 %v106, %v105
  %v120 = vpack.c.b16 %v108, %v107
  %v121 = vpack.c.b16 %v110, %v109
  %v122 = vpack.c.b16 %v112, %v111
  %v123 = vpack.c.b16 %v114, %v113
  %v124 = vpack.c.b16 %v116, %v115
  %v149 = vunpack.c.l.b16 %v69
  %v150 = vunpack.c.l.b16 %v70
  %v151 = vunpack.c.l.b16 %v71
  %v152 = vunpack.c.l.b16 %v72
  %v153 = vunpack.c.l.b16 %v73
  %v154 = vunpack.c.l.b16 %v74
  %v155 = vunpack.c.l.b16 %v75
  %v156 = vunpack.c.l.b16 %v76
  %v157 = vunpack.c.l.b16 %v77
  %v158 = vunpack.c.l.b16 %v78
  %v159 = vunpack.c.l.b16 %v79
  %v160 = vunpack.c.l.b16 %v80
  %v161 = vunpack.c.l.b16 %v81
  %v162 = vunpack.c.l.b16 %v82
  %v163 = vunpack.c.l.b16 %v83
  %v164 = vunpack.c.l.b16 %v84
  %v165 = vpack.c.b16 %v150, %v149
  %v166 = vpack.c.b16 %v152, %v151
  %v167 = vpack.c.b16 %v154, %v153
  %v168 = vpack.c.b16 %v156, %v155
  %v169 = vpack.c.b16 %v158, %v157
  %v170 = vpack.c.b16 %v160, %v159
  %v171 = vpack.c.b16 %v162, %v161
  %v172 = vpack.c.b16 %v164, %v163
  %181 = vmatpush.bf16.msra.mxu0 %v172
  %182 = vmatpush.bf16.msra.mxu0 %v171
  %183 = vmatpush.bf16.msra.mxu0 %v170
  %184 = vmatpush.bf16.msra.mxu0 %v169
  %185 = vmatpush.bf16.msra.mxu0 %v168
  %186 = vmatpush.bf16.msra.mxu0 %v167
  %187 = vmatpush.bf16.msra.mxu0 %v166
  %188 = vmatpush.bf16.msra.mxu0 %v165
  %189 = vmatmul.bf16.gmra.mxu0 %v117
  %v190 = vpop.f32.mrf.mxu0
  %v191 = vadd.f32 0.0, %v190
  %v192 = vpop.f32.mrf.mxu0
  %v193 = vadd.f32 0.0, %v192
  %194 = vmatmul.bf16.gmra.mxu0 %v118
  %v195 = vpop.f32.mrf.mxu0
  %v196 = vadd.f32 0.0, %v195
  %v197 = vpop.f32.mrf.mxu0
  %v198 = vadd.f32 0.0, %v197
  %199 = vmatmul.bf16.gmra.mxu0 %v119
  %v200 = vpop.f32.mrf.mxu0
  %v201 = vadd.f32 0.0, %v200
  %v202 = vpop.f32.mrf.mxu0
  %v203 = vadd.f32 0.0, %v202
  %204 = vmatmul.bf16.gmra.mxu0 %v120
  %v205 = vpop.f32.mrf.mxu0
  %v206 = vadd.f32 0.0, %v205
  %v207 = vpop.f32.mrf.mxu0
  %v208 = vadd.f32 0.0, %v207
  %209 = vmatmul.bf16.gmra.mxu0 %v121
  %v210 = vpop.f32.mrf.mxu0
  %v211 = vadd.f32 0.0, %v210
  %v212 = vpop.f32.mrf.mxu0
  %v213 = vadd.f32 0.0, %v212
  %214 = vmatmul.bf16.gmra.mxu0 %v122
  %v215 = vpop.f32.mrf.mxu0
  %v216 = vadd.f32 0.0, %v215
  %v217 = vpop.f32.mrf.mxu0
  %v218 = vadd.f32 0.0, %v217
  %219 = vmatmul.bf16.gmra.mxu0 %v123
  %v220 = vpop.f32.mrf.mxu0
  %v221 = vadd.f32 0.0, %v220
  %v222 = vpop.f32.mrf.mxu0
  %v223 = vadd.f32 0.0, %v222
  %224 = vmatmul.bf16.gmra.mxu0 %v124
  %v225 = vpop.f32.mrf.mxu0
  %v226 = vadd.f32 0.0, %v225
  %v227 = vpop.f32.mrf.mxu0
  %v228 = vadd.f32 0.0, %v227
  %229 = vdwg.mxu0
  %v230 = vadd.f32 %v37, %v191
  %v231 = vadd.f32 %v38, %v193
  %v232 = vadd.f32 %v39, %v196
  %v233 = vadd.f32 %v40, %v198
  %v234 = vadd.f32 %v41, %v201
  %v235 = vadd.f32 %v42, %v203
  %v236 = vadd.f32 %v43, %v206
  %v237 = vadd.f32 %v44, %v208
  %v238 = vadd.f32 %v45, %v211
  %v239 = vadd.f32 %v46, %v213
  %v240 = vadd.f32 %v47, %v216
  %v241 = vadd.f32 %v48, %v218
  %v242 = vadd.f32 %v49, %v221
  %v243 = vadd.f32 %v50, %v223
  %v244 = vadd.f32 %v51, %v226
  %v245 = vadd.f32 %v52, %v228
  %246 = vst [vmem:[#allocation2] sm:$0xff] %v230
  %247 = vst [vmem:[#allocation2 + $0x8] sm:$0xff] %v231
  %248 = vst [vmem:[#allocation2 + $0x10] sm:$0xff] %v232
  %249 = vst [vmem:[#allocation2 + $0x18] sm:$0xff] %v233
  %250 = vst [vmem:[#allocation2 + $0x20] sm:$0xff] %v234
  %251 = vst [vmem:[#allocation2 + $0x28] sm:$0xff] %v235
  %252 = vst [vmem:[#allocation2 + $0x30] sm:$0xff] %v236
  %253 = vst [vmem:[#allocation2 + $0x38] sm:$0xff] %v237
  %254 = vst [vmem:[#allocation2 + $0x40] sm:$0xff] %v238
  %255 = vst [vmem:[#allocation2 + $0x48] sm:$0xff] %v239
  %256 = vst [vmem:[#allocation2 + $0x50] sm:$0xff] %v240
  %257 = vst [vmem:[#allocation2 + $0x58] sm:$0xff] %v241
  %258 = vst [vmem:[#allocation2 + $0x60] sm:$0xff] %v242
  %259 = vst [vmem:[#allocation2 + $0x68] sm:$0xff] %v243
  %260 = vst [vmem:[#allocation2 + $0x70] sm:$0xff] %v244
  %261 = vst [vmem:[#allocation2 + $0x78] sm:$0xff] %v245
  // Predicated region
  $region22: #{basic_block_forward.3} parent=0 // pred_check
    %p262 = pneg %p17
  $region23: #{basic_block_forward.3} parent=0 // pred_check_branch
    %264 = sbr.rel (%p262) target = $region25
  $region24: #{basic_block_forward.3} parent=0 // pred_region
    %v265 = vld [vmem:[#allocation2] sm:$0xff]
    %v266 = vld [vmem:[#allocation2 + $0x8] sm:$0xff]
    %v267 = vld [vmem:[#allocation2 + $0x10] sm:$0xff]
    %v268 = vld [vmem:[#allocation2 + $0x18] sm:$0xff]
    %v269 = vld [vmem:[#allocation2 + $0x20] sm:$0xff]
    %v270 = vld [vmem:[#allocation2 + $0x28] sm:$0xff]
    %v271 = vld [vmem:[#allocation2 + $0x30] sm:$0xff]
    %v272 = vld [vmem:[#allocation2 + $0x38] sm:$0xff]
    %v273 = vld [vmem:[#allocation2 + $0x40] sm:$0xff]
    %v274 = vld [vmem:[#allocation2 + $0x48] sm:$0xff]
    %v275 = vld [vmem:[#allocation2 + $0x50] sm:$0xff]
    %v276 = vld [vmem:[#allocation2 + $0x58] sm:$0xff]
    %v277 = vld [vmem:[#allocation2 + $0x60] sm:$0xff]
    %v278 = vld [vmem:[#allocation2 + $0x68] sm:$0xff]
    %v279 = vld [vmem:[#allocation2 + $0x70] sm:$0xff]
    %v280 = vld [vmem:[#allocation2 + $0x78] sm:$0xff]
    %v281 = vld [vmem:[%s2] sm:$0x1]
    %v283 = vperm.slane %v281, 0
    %v285 = vmul.f32 %v265, %v283
    %v286 = vmul.f32 %v266, %v283
    %v287 = vmul.f32 %v267, %v283
    %v288 = vmul.f32 %v268, %v283
    %v289 = vmul.f32 %v269, %v283
    %v290 = vmul.f32 %v270, %v283
    %v291 = vmul.f32 %v271, %v283
    %v292 = vmul.f32 %v272, %v283
    %v293 = vmul.f32 %v273, %v283
    %v294 = vmul.f32 %v274, %v283
    %v295 = vmul.f32 %v275, %v283
    %v296 = vmul.f32 %v276, %v283
    %v297 = vmul.f32 %v277, %v283
    %v298 = vmul.f32 %v278, %v283
    %v299 = vmul.f32 %v279, %v283
    %v300 = vmul.f32 %v280, %v283
    %v301 = vld [vmem:[%s3] sm:$0x1]
    %v303 = vperm.slane %v301, 0
    %v305 = vadd.f32 %v285, %v303
    %v306 = vadd.f32 %v286, %v303
    %v307 = vadd.f32 %v287, %v303
    %v308 = vadd.f32 %v288, %v303
    %v309 = vadd.f32 %v289, %v303
    %v310 = vadd.f32 %v290, %v303
    %v311 = vadd.f32 %v291, %v303
    %v312 = vadd.f32 %v292, %v303
    %v313 = vadd.f32 %v293, %v303
    %v314 = vadd.f32 %v294, %v303
    %v315 = vadd.f32 %v295, %v303
    %v316 = vadd.f32 %v296, %v303
    %v317 = vadd.f32 %v297, %v303
    %v318 = vadd.f32 %v298, %v303
    %v319 = vadd.f32 %v299, %v303
    %v320 = vadd.f32 %v300, %v303
    %v321 = vmax.f32 %v305, 0.0
    %v322 = vmax.f32 %v306, 0.0
    %v323 = vmax.f32 %v307, 0.0
    %v324 = vmax.f32 %v308, 0.0
    %v325 = vmax.f32 %v309, 0.0
    %v326 = vmax.f32 %v310, 0.0
    %v327 = vmax.f32 %v311, 0.0
    %v328 = vmax.f32 %v312, 0.0
    %v329 = vmax.f32 %v313, 0.0
    %v330 = vmax.f32 %v314, 0.0
    %v331 = vmax.f32 %v315, 0.0
    %v332 = vmax.f32 %v316, 0.0
    %v333 = vmax.f32 %v317, 0.0
    %v334 = vmax.f32 %v318, 0.0
    %v335 = vmax.f32 %v319, 0.0
    %v336 = vmax.f32 %v320, 0.0
    %v337 = vpack.c.bf16 %v321, %v321
    %v338 = vpack.c.bf16 %v322, %v322
    %v339 = vpack.c.bf16 %v323, %v323
    %v340 = vpack.c.bf16 %v324, %v324
    %v341 = vpack.c.bf16 %v325, %v325
    %v342 = vpack.c.bf16 %v326, %v326
    %v343 = vpack.c.bf16 %v327, %v327
    %v344 = vpack.c.bf16 %v328, %v328
    %v345 = vpack.c.bf16 %v329, %v329
    %v346 = vpack.c.bf16 %v330, %v330
    %v347 = vpack.c.bf16 %v331, %v331
    %v348 = vpack.c.bf16 %v332, %v332
    %v349 = vpack.c.bf16 %v333, %v333
    %v350 = vpack.c.bf16 %v334, %v334
    %v351 = vpack.c.bf16 %v335, %v335
    %v352 = vpack.c.bf16 %v336, %v336
    %353 = vst [vmem:[%s4] sm:$0xf] %v337
    %354 = vst [vmem:[%s4 + $0x4] sm:$0xf] %v338
    %355 = vst [vmem:[%s4 + $0x8] sm:$0xf] %v339
    %356 = vst [vmem:[%s4 + $0xc] sm:$0xf] %v340
    %357 = vst [vmem:[%s4 + $0x10] sm:$0xf] %v341
    %358 = vst [vmem:[%s4 + $0x14] sm:$0xf] %v342
    %359 = vst [vmem:[%s4 + $0x18] sm:$0xf] %v343
    %360 = vst [vmem:[%s4 + $0x1c] sm:$0xf] %v344
    %361 = vst [vmem:[%s4 + $0x20] sm:$0xf] %v345
    %362 = vst [vmem:[%s4 + $0x24] sm:$0xf] %v346
    %363 = vst [vmem:[%s4 + $0x28] sm:$0xf] %v347
    %364 = vst [vmem:[%s4 + $0x2c] sm:$0xf] %v348
    %365 = vst [vmem:[%s4 + $0x30] sm:$0xf] %v349
    %366 = vst [vmem:[%s4 + $0x34] sm:$0xf] %v350
    %367 = vst [vmem:[%s4 + $0x38] sm:$0xf] %v351
    %368 = vst [vmem:[%s4 + $0x3c] sm:$0xf] %v352
  $region25: #{basic_block_forward.3} parent=0 // pred_fallthru
    _
  // Predicated region
  $region26: #{basic_block_forward.3} parent=0 // pred_check
    _
  $region27: #{basic_block_forward.3} parent=0 // pred_check_branch
    %370 = sbr.rel (0) target = $region29
  $region28: #{basic_block_forward.3} parent=0 // pred_region
    _
  $region29: #{basic_block_forward.3} parent=0 // pred_fallthru
    _
  // Predicated region
  $region30: #{basic_block_forward.3} parent=0 // pred_check
    _
  $region31: #{basic_block_forward.3} parent=0 // pred_check_branch
    %372 = sbr.rel (0) target = $region33
  $region32: #{basic_block_forward.3} parent=0 // pred_region
    _
  $region33: #{basic_block_forward.3} parent=0 // pred_fallthru
    _

// kernel: basic_block_forward.4
$region0: #{basic_block_forward.4}
  #allocation0 [shape = 'u32[]', space=smem, size = 0x4, offset = 0x4, fixed_abs, tag = 'smem constant byte address 0x4 - core index']
  #allocation1 [shape = 'u32[72,128]{1,0:T(1,128)}', space=vmem, size = 0x9000, scoped, tag = 'internal scratch']
  #allocation2 [shape = 'f32[128,128]{1,0:T(8,128)}', space=vmem, size = 0x10000, scoped, tag = 'scratch operand']
  %s0 = inlined_call_operand.vmem [shape: bf16[128,128], index: 0, kind: input, shape index: {}]
  %s1 = inlined_call_operand.vmem [shape: bf16[128,128], index: 1, kind: input, shape index: {}]
  %s2 = inlined_call_operand.vmem [shape: f32[128,128], index: 2, kind: output, shape index: {}]
  %s3 = sld [smem:[#allocation0]]
  $region26: #{basic_block_forward.4} parent=0
    _
  %s5 = ssub.s32 1, %s3
  %s6 = scalar_select 0, %s5, %s3
  // Predicated region
  $region2: #{basic_block_forward.4} parent=0 // pred_check
    _
  $region3: #{basic_block_forward.4} parent=0 // pred_check_branch
    %8 = sbr.rel (0) target = $region5
  $region4: #{basic_block_forward.4} parent=0 // pred_region
    _
  $region5: #{basic_block_forward.4} parent=0 // pred_fallthru
    _
  // Predicated region
  $region6: #{basic_block_forward.4} parent=0 // pred_check
    _
  $region7: #{basic_block_forward.4} parent=0 // pred_check_branch
    %10 = sbr.rel (0) target = $region9
  $region8: #{basic_block_forward.4} parent=0 // pred_region
    _
  $region9: #{basic_block_forward.4} parent=0 // pred_fallthru
    _
  %p11 = scmp.eq.s32.totalorder 0, 0
  // Predicated region
  $region10: #{basic_block_forward.4} parent=0 // pred_check
    %p12 = pneg %p11
  $region11: #{basic_block_forward.4} parent=0 // pred_check_branch
    %14 = sbr.rel (%p12) target = $region13
  $region12: #{basic_block_forward.4} parent=0 // pred_region
    %15 = vst [vmem:[#allocation2] sm:$0xff] 0.0
    %16 = vst [vmem:[#allocation2 + $0x8] sm:$0xff] 0.0
    %17 = vst [vmem:[#allocation2 + $0x10] sm:$0xff] 0.0
    %18 = vst [vmem:[#allocation2 + $0x18] sm:$0xff] 0.0
    %19 = vst [vmem:[#allocation2 + $0x20] sm:$0xff] 0.0
    %20 = vst [vmem:[#allocation2 + $0x28] sm:$0xff] 0.0
    %21 = vst [vmem:[#allocation2 + $0x30] sm:$0xff] 0.0
    %22 = vst [vmem:[#allocation2 + $0x38] sm:$0xff] 0.0
    %23 = vst [vmem:[#allocation2 + $0x40] sm:$0xff] 0.0
    %24 = vst [vmem:[#allocation2 + $0x48] sm:$0xff] 0.0
    %25 = vst [vmem:[#allocation2 + $0x50] sm:$0xff] 0.0
    %26 = vst [vmem:[#allocation2 + $0x58] sm:$0xff] 0.0
    %27 = vst [vmem:[#allocation2 + $0x60] sm:$0xff] 0.0
    %28 = vst [vmem:[#allocation2 + $0x68] sm:$0xff] 0.0
    %29 = vst [vmem:[#allocation2 + $0x70] sm:$0xff] 0.0
    %30 = vst [vmem:[#allocation2 + $0x78] sm:$0xff] 0.0
  $region13: #{basic_block_forward.4} parent=0 // pred_fallthru
    _
  %v31 = vld [vmem:[#allocation2] sm:$0xff]
  %v32 = vld [vmem:[#allocation2 + $0x8] sm:$0xff]
  %v33 = vld [vmem:[#allocation2 + $0x10] sm:$0xff]
  %v34 = vld [vmem:[#allocation2 + $0x18] sm:$0xff]
  %v35 = vld [vmem:[#allocation2 + $0x20] sm:$0xff]
  %v36 = vld [vmem:[#allocation2 + $0x28] sm:$0xff]
  %v37 = vld [vmem:[#allocation2 + $0x30] sm:$0xff]
  %v38 = vld [vmem:[#allocation2 + $0x38] sm:$0xff]
  %v39 = vld [vmem:[#allocation2 + $0x40] sm:$0xff]
  %v40 = vld [vmem:[#allocation2 + $0x48] sm:$0xff]
  %v41 = vld [vmem:[#allocation2 + $0x50] sm:$0xff]
  %v42 = vld [vmem:[#allocation2 + $0x58] sm:$0xff]
  %v43 = vld [vmem:[#allocation2 + $0x60] sm:$0xff]
  %v44 = vld [vmem:[#allocation2 + $0x68] sm:$0xff]
  %v45 = vld [vmem:[#allocation2 + $0x70] sm:$0xff]
  %v46 = vld [vmem:[#allocation2 + $0x78] sm:$0xff]
  %v47 = vld [vmem:[%s0] sm:$0xf]
  %v48 = vld [vmem:[%s0 + $0x4] sm:$0xf]
  %v49 = vld [vmem:[%s0 + $0x8] sm:$0xf]
  %v50 = vld [vmem:[%s0 + $0xc] sm:$0xf]
  %v51 = vld [vmem:[%s0 + $0x10] sm:$0xf]
  %v52 = vld [vmem:[%s0 + $0x14] sm:$0xf]
  %v53 = vld [vmem:[%s0 + $0x18] sm:$0xf]
  %v54 = vld [vmem:[%s0 + $0x1c] sm:$0xf]
  %v55 = vld [vmem:[%s0 + $0x20] sm:$0xf]
  %v56 = vld [vmem:[%s0 + $0x24] sm:$0xf]
  %v57 = vld [vmem:[%s0 + $0x28] sm:$0xf]
  %v58 = vld [vmem:[%s0 + $0x2c] sm:$0xf]
  %v59 = vld [vmem:[%s0 + $0x30] sm:$0xf]
  %v60 = vld [vmem:[%s0 + $0x34] sm:$0xf]
  %v61 = vld [vmem:[%s0 + $0x38] sm:$0xf]
  %v62 = vld [vmem:[%s0 + $0x3c] sm:$0xf]
  %v63 = vld [vmem:[%s1] sm:$0xf]
  %v64 = vld [vmem:[%s1 + $0x4] sm:$0xf]
  %v65 = vld [vmem:[%s1 + $0x8] sm:$0xf]
  %v66 = vld [vmem:[%s1 + $0xc] sm:$0xf]
  %v67 = vld [vmem:[%s1 + $0x10] sm:$0xf]
  %v68 = vld [vmem:[%s1 + $0x14] sm:$0xf]
  %v69 = vld [vmem:[%s1 + $0x18] sm:$0xf]
  %v70 = vld [vmem:[%s1 + $0x1c] sm:$0xf]
  %v71 = vld [vmem:[%s1 + $0x20] sm:$0xf]
  %v72 = vld [vmem:[%s1 + $0x24] sm:$0xf]
  %v73 = vld [vmem:[%s1 + $0x28] sm:$0xf]
  %v74 = vld [vmem:[%s1 + $0x2c] sm:$0xf]
  %v75 = vld [vmem:[%s1 + $0x30] sm:$0xf]
  %v76 = vld [vmem:[%s1 + $0x34] sm:$0xf]
  %v77 = vld [vmem:[%s1 + $0x38] sm:$0xf]
  %v78 = vld [vmem:[%s1 + $0x3c] sm:$0xf]
  %v95 = vunpack.c.l.b16 %v47
  %v96 = vunpack.c.l.b16 %v48
  %v97 = vunpack.c.l.b16 %v49
  %v98 = vunpack.c.l.b16 %v50
  %v99 = vunpack.c.l.b16 %v51
  %v100 = vunpack.c.l.b16 %v52
  %v101 = vunpack.c.l.b16 %v53
  %v102 = vunpack.c.l.b16 %v54
  %v103 = vunpack.c.l.b16 %v55
  %v104 = vunpack.c.l.b16 %v56
  %v105 = vunpack.c.l.b16 %v57
  %v106 = vunpack.c.l.b16 %v58
  %v107 = vunpack.c.l.b16 %v59
  %v108 = vunpack.c.l.b16 %v60
  %v109 = vunpack.c.l.b16 %v61
  %v110 = vunpack.c.l.b16 %v62
  %v111 = vpack.c.b16 %v96, %v95
  %v112 = vpack.c.b16 %v98, %v97
  %v113 = vpack.c.b16 %v100, %v99
  %v114 = vpack.c.b16 %v102, %v101
  %v115 = vpack.c.b16 %v104, %v103
  %v116 = vpack.c.b16 %v106, %v105
  %v117 = vpack.c.b16 %v108, %v107
  %v118 = vpack.c.b16 %v110, %v109
  %v143 = vunpack.c.l.b16 %v63
  %v144 = vunpack.c.l.b16 %v64
  %v145 = vunpack.c.l.b16 %v65
  %v146 = vunpack.c.l.b16 %v66
  %v147 = vunpack.c.l.b16 %v67
  %v148 = vunpack.c.l.b16 %v68
  %v149 = vunpack.c.l.b16 %v69
  %v150 = vunpack.c.l.b16 %v70
  %v151 = vunpack.c.l.b16 %v71
  %v152 = vunpack.c.l.b16 %v72
  %v153 = vunpack.c.l.b16 %v73
  %v154 = vunpack.c.l.b16 %v74
  %v155 = vunpack.c.l.b16 %v75
  %v156 = vunpack.c.l.b16 %v76
  %v157 = vunpack.c.l.b16 %v77
  %v158 = vunpack.c.l.b16 %v78
  %v159 = vpack.c.b16 %v144, %v143
  %v160 = vpack.c.b16 %v146, %v145
  %v161 = vpack.c.b16 %v148, %v147
  %v162 = vpack.c.b16 %v150, %v149
  %v163 = vpack.c.b16 %v152, %v151
  %v164 = vpack.c.b16 %v154, %v153
  %v165 = vpack.c.b16 %v156, %v155
  %v166 = vpack.c.b16 %v158, %v157
  %175 = vmatpush.bf16.msra.mxu0 %v166
  %176 = vmatpush.bf16.msra.mxu0 %v165
  %177 = vmatpush.bf16.msra.mxu0 %v164
  %178 = vmatpush.bf16.msra.mxu0 %v163
  %179 = vmatpush.bf16.msra.mxu0 %v162
  %180 = vmatpush.bf16.msra.mxu0 %v161
  %181 = vmatpush.bf16.msra.mxu0 %v160
  %182 = vmatpush.bf16.msra.mxu0 %v159
  %183 = vmatmul.bf16.gmra.mxu0 %v111
  %v184 = vpop.f32.mrf.mxu0
  %v185 = vadd.f32 0.0, %v184
  %v186 = vpop.f32.mrf.mxu0
  %v187 = vadd.f32 0.0, %v186
  %188 = vmatmul.bf16.gmra.mxu0 %v112
  %v189 = vpop.f32.mrf.mxu0
  %v190 = vadd.f32 0.0, %v189
  %v191 = vpop.f32.mrf.mxu0
  %v192 = vadd.f32 0.0, %v191
  %193 = vmatmul.bf16.gmra.mxu0 %v113
  %v194 = vpop.f32.mrf.mxu0
  %v195 = vadd.f32 0.0, %v194
  %v196 = vpop.f32.mrf.mxu0
  %v197 = vadd.f32 0.0, %v196
  %198 = vmatmul.bf16.gmra.mxu0 %v114
  %v199 = vpop.f32.mrf.mxu0
  %v200 = vadd.f32 0.0, %v199
  %v201 = vpop.f32.mrf.mxu0
  %v202 = vadd.f32 0.0, %v201
  %203 = vmatmul.bf16.gmra.mxu0 %v115
  %v204 = vpop.f32.mrf.mxu0
  %v205 = vadd.f32 0.0, %v204
  %v206 = vpop.f32.mrf.mxu0
  %v207 = vadd.f32 0.0, %v206
  %208 = vmatmul.bf16.gmra.mxu0 %v116
  %v209 = vpop.f32.mrf.mxu0
  %v210 = vadd.f32 0.0, %v209
  %v211 = vpop.f32.mrf.mxu0
  %v212 = vadd.f32 0.0, %v211
  %213 = vmatmul.bf16.gmra.mxu0 %v117
  %v214 = vpop.f32.mrf.mxu0
  %v215 = vadd.f32 0.0, %v214
  %v216 = vpop.f32.mrf.mxu0
  %v217 = vadd.f32 0.0, %v216
  %218 = vmatmul.bf16.gmra.mxu0 %v118
  %v219 = vpop.f32.mrf.mxu0
  %v220 = vadd.f32 0.0, %v219
  %v221 = vpop.f32.mrf.mxu0
  %v222 = vadd.f32 0.0, %v221
  %223 = vdwg.mxu0
  %v224 = vadd.f32 %v31, %v185
  %v225 = vadd.f32 %v32, %v187
  %v226 = vadd.f32 %v33, %v190
  %v227 = vadd.f32 %v34, %v192
  %v228 = vadd.f32 %v35, %v195
  %v229 = vadd.f32 %v36, %v197
  %v230 = vadd.f32 %v37, %v200
  %v231 = vadd.f32 %v38, %v202
  %v232 = vadd.f32 %v39, %v205
  %v233 = vadd.f32 %v40, %v207
  %v234 = vadd.f32 %v41, %v210
  %v235 = vadd.f32 %v42, %v212
  %v236 = vadd.f32 %v43, %v215
  %v237 = vadd.f32 %v44, %v217
  %v238 = vadd.f32 %v45, %v220
  %v239 = vadd.f32 %v46, %v222
  %240 = vst [vmem:[#allocation2] sm:$0xff] %v224
  %241 = vst [vmem:[#allocation2 + $0x8] sm:$0xff] %v225
  %242 = vst [vmem:[#allocation2 + $0x10] sm:$0xff] %v226
  %243 = vst [vmem:[#allocation2 + $0x18] sm:$0xff] %v227
  %244 = vst [vmem:[#allocation2 + $0x20] sm:$0xff] %v228
  %245 = vst [vmem:[#allocation2 + $0x28] sm:$0xff] %v229
  %246 = vst [vmem:[#allocation2 + $0x30] sm:$0xff] %v230
  %247 = vst [vmem:[#allocation2 + $0x38] sm:$0xff] %v231
  %248 = vst [vmem:[#allocation2 + $0x40] sm:$0xff] %v232
  %249 = vst [vmem:[#allocation2 + $0x48] sm:$0xff] %v233
  %250 = vst [vmem:[#allocation2 + $0x50] sm:$0xff] %v234
  %251 = vst [vmem:[#allocation2 + $0x58] sm:$0xff] %v235
  %252 = vst [vmem:[#allocation2 + $0x60] sm:$0xff] %v236
  %253 = vst [vmem:[#allocation2 + $0x68] sm:$0xff] %v237
  %254 = vst [vmem:[#allocation2 + $0x70] sm:$0xff] %v238
  %255 = vst [vmem:[#allocation2 + $0x78] sm:$0xff] %v239
  // Predicated region
  $region14: #{basic_block_forward.4} parent=0 // pred_check
    %p256 = pneg %p11
  $region15: #{basic_block_forward.4} parent=0 // pred_check_branch
    %258 = sbr.rel (%p256) target = $region17
  $region16: #{basic_block_forward.4} parent=0 // pred_region
    %v259 = vld [vmem:[#allocation2] sm:$0xff]
    %v260 = vld [vmem:[#allocation2 + $0x8] sm:$0xff]
    %v261 = vld [vmem:[#allocation2 + $0x10] sm:$0xff]
    %v262 = vld [vmem:[#allocation2 + $0x18] sm:$0xff]
    %v263 = vld [vmem:[#allocation2 + $0x20] sm:$0xff]
    %v264 = vld [vmem:[#allocation2 + $0x28] sm:$0xff]
    %v265 = vld [vmem:[#allocation2 + $0x30] sm:$0xff]
    %v266 = vld [vmem:[#allocation2 + $0x38] sm:$0xff]
    %v267 = vld [vmem:[#allocation2 + $0x40] sm:$0xff]
    %v268 = vld [vmem:[#allocation2 + $0x48] sm:$0xff]
    %v269 = vld [vmem:[#allocation2 + $0x50] sm:$0xff]
    %v270 = vld [vmem:[#allocation2 + $0x58] sm:$0xff]
    %v271 = vld [vmem:[#allocation2 + $0x60] sm:$0xff]
    %v272 = vld [vmem:[#allocation2 + $0x68] sm:$0xff]
    %v273 = vld [vmem:[#allocation2 + $0x70] sm:$0xff]
    %v274 = vld [vmem:[#allocation2 + $0x78] sm:$0xff]
    %275 = vst [vmem:[%s2] sm:$0xff] %v259
    %276 = vst [vmem:[%s2 + $0x8] sm:$0xff] %v260
    %277 = vst [vmem:[%s2 + $0x10] sm:$0xff] %v261
    %278 = vst [vmem:[%s2 + $0x18] sm:$0xff] %v262
    %279 = vst [vmem:[%s2 + $0x20] sm:$0xff] %v263
    %280 = vst [vmem:[%s2 + $0x28] sm:$0xff] %v264
    %281 = vst [vmem:[%s2 + $0x30] sm:$0xff] %v265
    %282 = vst [vmem:[%s2 + $0x38] sm:$0xff] %v266
    %283 = vst [vmem:[%s2 + $0x40] sm:$0xff] %v267
    %284 = vst [vmem:[%s2 + $0x48] sm:$0xff] %v268
    %285 = vst [vmem:[%s2 + $0x50] sm:$0xff] %v269
    %286 = vst [vmem:[%s2 + $0x58] sm:$0xff] %v270
    %287 = vst [vmem:[%s2 + $0x60] sm:$0xff] %v271
    %288 = vst [vmem:[%s2 + $0x68] sm:$0xff] %v272
    %289 = vst [vmem:[%s2 + $0x70] sm:$0xff] %v273
    %290 = vst [vmem:[%s2 + $0x78] sm:$0xff] %v274
  $region17: #{basic_block_forward.4} parent=0 // pred_fallthru
    _
  // Predicated region
  $region18: #{basic_block_forward.4} parent=0 // pred_check
    _
  $region19: #{basic_block_forward.4} parent=0 // pred_check_branch
    %292 = sbr.rel (0) target = $region21
  $region20: #{basic_block_forward.4} parent=0 // pred_region
    _
  $region21: #{basic_block_forward.4} parent=0 // pred_fallthru
    _
  // Predicated region
  $region22: #{basic_block_forward.4} parent=0 // pred_check
    _
  $region23: #{basic_block_forward.4} parent=0 // pred_check_branch
    %294 = sbr.rel (0) target = $region25
  $region24: #{basic_block_forward.4} parent=0 // pred_region
    _
  $region25: #{basic_block_forward.4} parent=0 // pred_fallthru
    _

// kernel: basic_block_forward.5
$region0: #{basic_block_forward.5}
  #allocation0 [shape = 'u32[]', space=smem, size = 0x4, offset = 0x4, fixed_abs, tag = 'smem constant byte address 0x4 - core index']
  #allocation1 [shape = 'u32[72,128]{1,0:T(1,128)}', space=vmem, size = 0x9000, scoped, tag = 'internal scratch']
  #allocation2 [shape = 'f32[128,128]{1,0:T(8,128)}', space=vmem, size = 0x10000, scoped, tag = 'scratch operand']
  %s0 = inlined_call_operand.vmem [shape: bf16[128,128], index: 0, kind: input, shape index: {}]
  %s1 = inlined_call_operand.vmem [shape: bf16[128,128], index: 1, kind: input, shape index: {}]
  %s2 = inlined_call_operand.vmem [shape: f32[128,128], index: 2, kind: input, shape index: {}]
  %s3 = inlined_call_operand.vmem [shape: f32[128,128], index: 3, kind: output, shape index: {}]
  %s4 = sld [smem:[#allocation0]]
  $region30: #{basic_block_forward.5} parent=0
    _
  %s6 = ssub.s32 1, %s4
  %s7 = scalar_select 0, %s6, %s4
  // Predicated region
  $region2: #{basic_block_forward.5} parent=0 // pred_check
    _
  $region3: #{basic_block_forward.5} parent=0 // pred_check_branch
    %9 = sbr.rel (0) target = $region5
  $region4: #{basic_block_forward.5} parent=0 // pred_region
    _
  $region5: #{basic_block_forward.5} parent=0 // pred_fallthru
    _
  // Predicated region
  $region6: #{basic_block_forward.5} parent=0 // pred_check
    _
  $region7: #{basic_block_forward.5} parent=0 // pred_check_branch
    %11 = sbr.rel (0) target = $region9
  $region8: #{basic_block_forward.5} parent=0 // pred_region
    _
  $region9: #{basic_block_forward.5} parent=0 // pred_fallthru
    _
  // Predicated region
  $region10: #{basic_block_forward.5} parent=0 // pred_check
    _
  $region11: #{basic_block_forward.5} parent=0 // pred_check_branch
    %13 = sbr.rel (0) target = $region13
  $region12: #{basic_block_forward.5} parent=0 // pred_region
    _
  $region13: #{basic_block_forward.5} parent=0 // pred_fallthru
    _
  %p14 = scmp.eq.s32.totalorder 0, 0
  // Predicated region
  $region14: #{basic_block_forward.5} parent=0 // pred_check
    %p15 = pneg %p14
  $region15: #{basic_block_forward.5} parent=0 // pred_check_branch
    %17 = sbr.rel (%p15) target = $region17
  $region16: #{basic_block_forward.5} parent=0 // pred_region
    %18 = vst [vmem:[#allocation2] sm:$0xff] 0.0
    %19 = vst [vmem:[#allocation2 + $0x8] sm:$0xff] 0.0
    %20 = vst [vmem:[#allocation2 + $0x10] sm:$0xff] 0.0
    %21 = vst [vmem:[#allocation2 + $0x18] sm:$0xff] 0.0
    %22 = vst [vmem:[#allocation2 + $0x20] sm:$0xff] 0.0
    %23 = vst [vmem:[#allocation2 + $0x28] sm:$0xff] 0.0
    %24 = vst [vmem:[#allocation2 + $0x30] sm:$0xff] 0.0
    %25 = vst [vmem:[#allocation2 + $0x38] sm:$0xff] 0.0
    %26 = vst [vmem:[#allocation2 + $0x40] sm:$0xff] 0.0
    %27 = vst [vmem:[#allocation2 + $0x48] sm:$0xff] 0.0
    %28 = vst [vmem:[#allocation2 + $0x50] sm:$0xff] 0.0
    %29 = vst [vmem:[#allocation2 + $0x58] sm:$0xff] 0.0
    %30 = vst [vmem:[#allocation2 + $0x60] sm:$0xff] 0.0
    %31 = vst [vmem:[#allocation2 + $0x68] sm:$0xff] 0.0
    %32 = vst [vmem:[#allocation2 + $0x70] sm:$0xff] 0.0
    %33 = vst [vmem:[#allocation2 + $0x78] sm:$0xff] 0.0
  $region17: #{basic_block_forward.5} parent=0 // pred_fallthru
    _
  %v34 = vld [vmem:[#allocation2] sm:$0xff]
  %v35 = vld [vmem:[#allocation2 + $0x8] sm:$0xff]
  %v36 = vld [vmem:[#allocation2 + $0x10] sm:$0xff]
  %v37 = vld [vmem:[#allocation2 + $0x18] sm:$0xff]
  %v38 = vld [vmem:[#allocation2 + $0x20] sm:$0xff]
  %v39 = vld [vmem:[#allocation2 + $0x28] sm:$0xff]
  %v40 = vld [vmem:[#allocation2 + $0x30] sm:$0xff]
  %v41 = vld [vmem:[#allocation2 + $0x38] sm:$0xff]
  %v42 = vld [vmem:[#allocation2 + $0x40] sm:$0xff]
  %v43 = vld [vmem:[#allocation2 + $0x48] sm:$0xff]
  %v44 = vld [vmem:[#allocation2 + $0x50] sm:$0xff]
  %v45 = vld [vmem:[#allocation2 + $0x58] sm:$0xff]
  %v46 = vld [vmem:[#allocation2 + $0x60] sm:$0xff]
  %v47 = vld [vmem:[#allocation2 + $0x68] sm:$0xff]
  %v48 = vld [vmem:[#allocation2 + $0x70] sm:$0xff]
  %v49 = vld [vmem:[#allocation2 + $0x78] sm:$0xff]
  %v50 = vld [vmem:[%s0] sm:$0xf]
  %v51 = vld [vmem:[%s0 + $0x4] sm:$0xf]
  %v52 = vld [vmem:[%s0 + $0x8] sm:$0xf]
  %v53 = vld [vmem:[%s0 + $0xc] sm:$0xf]
  %v54 = vld [vmem:[%s0 + $0x10] sm:$0xf]
  %v55 = vld [vmem:[%s0 + $0x14] sm:$0xf]
  %v56 = vld [vmem:[%s0 + $0x18] sm:$0xf]
  %v57 = vld [vmem:[%s0 + $0x1c] sm:$0xf]
  %v58 = vld [vmem:[%s0 + $0x20] sm:$0xf]
  %v59 = vld [vmem:[%s0 + $0x24] sm:$0xf]
  %v60 = vld [vmem:[%s0 + $0x28] sm:$0xf]
  %v61 = vld [vmem:[%s0 + $0x2c] sm:$0xf]
  %v62 = vld [vmem:[%s0 + $0x30] sm:$0xf]
  %v63 = vld [vmem:[%s0 + $0x34] sm:$0xf]
  %v64 = vld [vmem:[%s0 + $0x38] sm:$0xf]
  %v65 = vld [vmem:[%s0 + $0x3c] sm:$0xf]
  %v66 = vld [vmem:[%s1] sm:$0xf]
  %v67 = vld [vmem:[%s1 + $0x4] sm:$0xf]
  %v68 = vld [vmem:[%s1 + $0x8] sm:$0xf]
  %v69 = vld [vmem:[%s1 + $0xc] sm:$0xf]
  %v70 = vld [vmem:[%s1 + $0x10] sm:$0xf]
  %v71 = vld [vmem:[%s1 + $0x14] sm:$0xf]
  %v72 = vld [vmem:[%s1 + $0x18] sm:$0xf]
  %v73 = vld [vmem:[%s1 + $0x1c] sm:$0xf]
  %v74 = vld [vmem:[%s1 + $0x20] sm:$0xf]
  %v75 = vld [vmem:[%s1 + $0x24] sm:$0xf]
  %v76 = vld [vmem:[%s1 + $0x28] sm:$0xf]
  %v77 = vld [vmem:[%s1 + $0x2c] sm:$0xf]
  %v78 = vld [vmem:[%s1 + $0x30] sm:$0xf]
  %v79 = vld [vmem:[%s1 + $0x34] sm:$0xf]
  %v80 = vld [vmem:[%s1 + $0x38] sm:$0xf]
  %v81 = vld [vmem:[%s1 + $0x3c] sm:$0xf]
  %v98 = vunpack.c.l.b16 %v50
  %v99 = vunpack.c.l.b16 %v51
  %v100 = vunpack.c.l.b16 %v52
  %v101 = vunpack.c.l.b16 %v53
  %v102 = vunpack.c.l.b16 %v54
  %v103 = vunpack.c.l.b16 %v55
  %v104 = vunpack.c.l.b16 %v56
  %v105 = vunpack.c.l.b16 %v57
  %v106 = vunpack.c.l.b16 %v58
  %v107 = vunpack.c.l.b16 %v59
  %v108 = vunpack.c.l.b16 %v60
  %v109 = vunpack.c.l.b16 %v61
  %v110 = vunpack.c.l.b16 %v62
  %v111 = vunpack.c.l.b16 %v63
  %v112 = vunpack.c.l.b16 %v64
  %v113 = vunpack.c.l.b16 %v65
  %v114 = vpack.c.b16 %v99, %v98
  %v115 = vpack.c.b16 %v101, %v100
  %v116 = vpack.c.b16 %v103, %v102
  %v117 = vpack.c.b16 %v105, %v104
  %v118 = vpack.c.b16 %v107, %v106
  %v119 = vpack.c.b16 %v109, %v108
  %v120 = vpack.c.b16 %v111, %v110
  %v121 = vpack.c.b16 %v113, %v112
  %v146 = vunpack.c.l.b16 %v66
  %v147 = vunpack.c.l.b16 %v67
  %v148 = vunpack.c.l.b16 %v68
  %v149 = vunpack.c.l.b16 %v69
  %v150 = vunpack.c.l.b16 %v70
  %v151 = vunpack.c.l.b16 %v71
  %v152 = vunpack.c.l.b16 %v72
  %v153 = vunpack.c.l.b16 %v73
  %v154 = vunpack.c.l.b16 %v74
  %v155 = vunpack.c.l.b16 %v75
  %v156 = vunpack.c.l.b16 %v76
  %v157 = vunpack.c.l.b16 %v77
  %v158 = vunpack.c.l.b16 %v78
  %v159 = vunpack.c.l.b16 %v79
  %v160 = vunpack.c.l.b16 %v80
  %v161 = vunpack.c.l.b16 %v81
  %v162 = vpack.c.b16 %v147, %v146
  %v163 = vpack.c.b16 %v149, %v148
  %v164 = vpack.c.b16 %v151, %v150
  %v165 = vpack.c.b16 %v153, %v152
  %v166 = vpack.c.b16 %v155, %v154
  %v167 = vpack.c.b16 %v157, %v156
  %v168 = vpack.c.b16 %v159, %v158
  %v169 = vpack.c.b16 %v161, %v160
  %178 = vmatpush.bf16.msra.mxu0 %v169
  %179 = vmatpush.bf16.msra.mxu0 %v168
  %180 = vmatpush.bf16.msra.mxu0 %v167
  %181 = vmatpush.bf16.msra.mxu0 %v166
  %182 = vmatpush.bf16.msra.mxu0 %v165
  %183 = vmatpush.bf16.msra.mxu0 %v164
  %184 = vmatpush.bf16.msra.mxu0 %v163
  %185 = vmatpush.bf16.msra.mxu0 %v162
  %186 = vmatmul.bf16.gmra.mxu0 %v114
  %v187 = vpop.f32.mrf.mxu0
  %v188 = vadd.f32 0.0, %v187
  %v189 = vpop.f32.mrf.mxu0
  %v190 = vadd.f32 0.0, %v189
  %191 = vmatmul.bf16.gmra.mxu0 %v115
  %v192 = vpop.f32.mrf.mxu0
  %v193 = vadd.f32 0.0, %v192
  %v194 = vpop.f32.mrf.mxu0
  %v195 = vadd.f32 0.0, %v194
  %196 = vmatmul.bf16.gmra.mxu0 %v116
  %v197 = vpop.f32.mrf.mxu0
  %v198 = vadd.f32 0.0, %v197
  %v199 = vpop.f32.mrf.mxu0
  %v200 = vadd.f32 0.0, %v199
  %201 = vmatmul.bf16.gmra.mxu0 %v117
  %v202 = vpop.f32.mrf.mxu0
  %v203 = vadd.f32 0.0, %v202
  %v204 = vpop.f32.mrf.mxu0
  %v205 = vadd.f32 0.0, %v204
  %206 = vmatmul.bf16.gmra.mxu0 %v118
  %v207 = vpop.f32.mrf.mxu0
  %v208 = vadd.f32 0.0, %v207
  %v209 = vpop.f32.mrf.mxu0
  %v210 = vadd.f32 0.0, %v209
  %211 = vmatmul.bf16.gmra.mxu0 %v119
  %v212 = vpop.f32.mrf.mxu0
  %v213 = vadd.f32 0.0, %v212
  %v214 = vpop.f32.mrf.mxu0
  %v215 = vadd.f32 0.0, %v214
  %216 = vmatmul.bf16.gmra.mxu0 %v120
  %v217 = vpop.f32.mrf.mxu0
  %v218 = vadd.f32 0.0, %v217
  %v219 = vpop.f32.mrf.mxu0
  %v220 = vadd.f32 0.0, %v219
  %221 = vmatmul.bf16.gmra.mxu0 %v121
  %v222 = vpop.f32.mrf.mxu0
  %v223 = vadd.f32 0.0, %v222
  %v224 = vpop.f32.mrf.mxu0
  %v225 = vadd.f32 0.0, %v224
  %226 = vdwg.mxu0
  %v227 = vadd.f32 %v34, %v188
  %v228 = vadd.f32 %v35, %v190
  %v229 = vadd.f32 %v36, %v193
  %v230 = vadd.f32 %v37, %v195
  %v231 = vadd.f32 %v38, %v198
  %v232 = vadd.f32 %v39, %v200
  %v233 = vadd.f32 %v40, %v203
  %v234 = vadd.f32 %v41, %v205
  %v235 = vadd.f32 %v42, %v208
  %v236 = vadd.f32 %v43, %v210
  %v237 = vadd.f32 %v44, %v213
  %v238 = vadd.f32 %v45, %v215
  %v239 = vadd.f32 %v46, %v218
  %v240 = vadd.f32 %v47, %v220
  %v241 = vadd.f32 %v48, %v223
  %v242 = vadd.f32 %v49, %v225
  %243 = vst [vmem:[#allocation2] sm:$0xff] %v227
  %244 = vst [vmem:[#allocation2 + $0x8] sm:$0xff] %v228
  %245 = vst [vmem:[#allocation2 + $0x10] sm:$0xff] %v229
  %246 = vst [vmem:[#allocation2 + $0x18] sm:$0xff] %v230
  %247 = vst [vmem:[#allocation2 + $0x20] sm:$0xff] %v231
  %248 = vst [vmem:[#allocation2 + $0x28] sm:$0xff] %v232
  %249 = vst [vmem:[#allocation2 + $0x30] sm:$0xff] %v233
  %250 = vst [vmem:[#allocation2 + $0x38] sm:$0xff] %v234
  %251 = vst [vmem:[#allocation2 + $0x40] sm:$0xff] %v235
  %252 = vst [vmem:[#allocation2 + $0x48] sm:$0xff] %v236
  %253 = vst [vmem:[#allocation2 + $0x50] sm:$0xff] %v237
  %254 = vst [vmem:[#allocation2 + $0x58] sm:$0xff] %v238
  %255 = vst [vmem:[#allocation2 + $0x60] sm:$0xff] %v239
  %256 = vst [vmem:[#allocation2 + $0x68] sm:$0xff] %v240
  %257 = vst [vmem:[#allocation2 + $0x70] sm:$0xff] %v241
  %258 = vst [vmem:[#allocation2 + $0x78] sm:$0xff] %v242
  // Predicated region
  $region18: #{basic_block_forward.5} parent=0 // pred_check
    %p259 = pneg %p14
  $region19: #{basic_block_forward.5} parent=0 // pred_check_branch
    %261 = sbr.rel (%p259) target = $region21
  $region20: #{basic_block_forward.5} parent=0 // pred_region
    %v262 = vld [vmem:[#allocation2] sm:$0xff]
    %v263 = vld [vmem:[#allocation2 + $0x8] sm:$0xff]
    %v264 = vld [vmem:[#allocation2 + $0x10] sm:$0xff]
    %v265 = vld [vmem:[#allocation2 + $0x18] sm:$0xff]
    %v266 = vld [vmem:[#allocation2 + $0x20] sm:$0xff]
    %v267 = vld [vmem:[#allocation2 + $0x28] sm:$0xff]
    %v268 = vld [vmem:[#allocation2 + $0x30] sm:$0xff]
    %v269 = vld [vmem:[#allocation2 + $0x38] sm:$0xff]
    %v270 = vld [vmem:[#allocation2 + $0x40] sm:$0xff]
    %v271 = vld [vmem:[#allocation2 + $0x48] sm:$0xff]
    %v272 = vld [vmem:[#allocation2 + $0x50] sm:$0xff]
    %v273 = vld [vmem:[#allocation2 + $0x58] sm:$0xff]
    %v274 = vld [vmem:[#allocation2 + $0x60] sm:$0xff]
    %v275 = vld [vmem:[#allocation2 + $0x68] sm:$0xff]
    %v276 = vld [vmem:[#allocation2 + $0x70] sm:$0xff]
    %v277 = vld [vmem:[#allocation2 + $0x78] sm:$0xff]
    %v278 = vld [vmem:[%s2] sm:$0xff]
    %v279 = vld [vmem:[%s2 + $0x8] sm:$0xff]
    %v280 = vld [vmem:[%s2 + $0x10] sm:$0xff]
    %v281 = vld [vmem:[%s2 + $0x18] sm:$0xff]
    %v282 = vld [vmem:[%s2 + $0x20] sm:$0xff]
    %v283 = vld [vmem:[%s2 + $0x28] sm:$0xff]
    %v284 = vld [vmem:[%s2 + $0x30] sm:$0xff]
    %v285 = vld [vmem:[%s2 + $0x38] sm:$0xff]
    %v286 = vld [vmem:[%s2 + $0x40] sm:$0xff]
    %v287 = vld [vmem:[%s2 + $0x48] sm:$0xff]
    %v288 = vld [vmem:[%s2 + $0x50] sm:$0xff]
    %v289 = vld [vmem:[%s2 + $0x58] sm:$0xff]
    %v290 = vld [vmem:[%s2 + $0x60] sm:$0xff]
    %v291 = vld [vmem:[%s2 + $0x68] sm:$0xff]
    %v292 = vld [vmem:[%s2 + $0x70] sm:$0xff]
    %v293 = vld [vmem:[%s2 + $0x78] sm:$0xff]
    %v294 = vadd.f32 %v262, %v278
    %v295 = vadd.f32 %v263, %v279
    %v296 = vadd.f32 %v264, %v280
    %v297 = vadd.f32 %v265, %v281
    %v298 = vadd.f32 %v266, %v282
    %v299 = vadd.f32 %v267, %v283
    %v300 = vadd.f32 %v268, %v284
    %v301 = vadd.f32 %v269, %v285
    %v302 = vadd.f32 %v270, %v286
    %v303 = vadd.f32 %v271, %v287
    %v304 = vadd.f32 %v272, %v288
    %v305 = vadd.f32 %v273, %v289
    %v306 = vadd.f32 %v274, %v290
    %v307 = vadd.f32 %v275, %v291
    %v308 = vadd.f32 %v276, %v292
    %v309 = vadd.f32 %v277, %v293
    %310 = vst [vmem:[%s3] sm:$0xff] %v294
    %311 = vst [vmem:[%s3 + $0x8] sm:$0xff] %v295
    %312 = vst [vmem:[%s3 + $0x10] sm:$0xff] %v296
    %313 = vst [vmem:[%s3 + $0x18] sm:$0xff] %v297
    %314 = vst [vmem:[%s3 + $0x20] sm:$0xff] %v298
    %315 = vst [vmem:[%s3 + $0x28] sm:$0xff] %v299
    %316 = vst [vmem:[%s3 + $0x30] sm:$0xff] %v300
    %317 = vst [vmem:[%s3 + $0x38] sm:$0xff] %v301
    %318 = vst [vmem:[%s3 + $0x40] sm:$0xff] %v302
    %319 = vst [vmem:[%s3 + $0x48] sm:$0xff] %v303
    %320 = vst [vmem:[%s3 + $0x50] sm:$0xff] %v304
    %321 = vst [vmem:[%s3 + $0x58] sm:$0xff] %v305
    %322 = vst [vmem:[%s3 + $0x60] sm:$0xff] %v306
    %323 = vst [vmem:[%s3 + $0x68] sm:$0xff] %v307
    %324 = vst [vmem:[%s3 + $0x70] sm:$0xff] %v308
    %325 = vst [vmem:[%s3 + $0x78] sm:$0xff] %v309
  $region21: #{basic_block_forward.5} parent=0 // pred_fallthru
    _
  // Predicated region
  $region22: #{basic_block_forward.5} parent=0 // pred_check
    _
  $region23: #{basic_block_forward.5} parent=0 // pred_check_branch
    %327 = sbr.rel (0) target = $region25
  $region24: #{basic_block_forward.5} parent=0 // pred_region
    _
  $region25: #{basic_block_forward.5} parent=0 // pred_fallthru
    _
  // Predicated region
  $region26: #{basic_block_forward.5} parent=0 // pred_check
    _
  $region27: #{basic_block_forward.5} parent=0 // pred_check_branch
    %329 = sbr.rel (0) target = $region29
  $region28: #{basic_block_forward.5} parent=0 // pred_region
    _
  $region29: #{basic_block_forward.5} parent=0 // pred_fallthru
    _

</llo_original>
